<compile_context>
chip_gen: v5e
topology: v5e:2x2
jax: 0.10.0
libtpu: 0.0.40
codegen_flags: <defaults>
</compile_context>

<pallas_src>
import math

import jax
import jax.numpy as jnp
from jax.experimental import pallas as pl
from jax.experimental.pallas import tpu as pltpu

# ---- problem sizes (small, consistent with the module) ----------------------
N_HEAD = 4
D_MODEL = 32
D_K = D_MODEL // N_HEAD        # = d_q = d_v = 8
SEQ = 8
BATCH = 2

K_PAD = 128                    # lane-padded fused feature dim ([xq|xk|xv|1|0])
BIAS_ROW = 3 * D_MODEL         # row 96 of the slab: fused biases
OW_ROW = 112                   # rows 112:120 of the slab: output proj (x is 0 there)


def mha_kernel(x_ref, w_ref, out_ref):
    """Single invocation, whole problem resident in VMEM.

    x_ref   : (B, S, 128)        host-augmented [xq | xk | xv | 1 | zero-pad]
    w_ref   : (128, 128)         packed parameter slab:
                                   rows   0:32 , cols  0:32  -> fused Q weights (scale folded)
                                   rows  32:64 , cols 32:64  -> fused K weights
                                   rows  64:96 , cols 64:72  -> V weights
                                   row       96, cols  0:72  -> fused [qb|kb|vb] biases
                                   rows 112:120, cols  0:32  -> output proj * (1/H)
    out_ref : (B, S, D + H*S)    cols 0:D = outputs, cols D+h*S:D+(h+1)*S = attn head h
    """
    B, S, _ = x_ref.shape
    H, D, DK = N_HEAD, D_MODEL, D_K

    x = x_ref[...].reshape(B * S, K_PAD)
    w = w_ref[...]

    # One block-diagonal projection matmul replaces 3 matmuls + 3 bias adds
    # (the trailing "1" column of x picks up the bias row of w).
    proj = jnp.dot(x, w, preferred_element_type=jnp.float32)        # (B*S, 128)

    q3 = proj[:, 0:H * DK].reshape(B, S, H * DK)                    # scale pre-folded
    k3 = proj[:, H * DK:2 * H * DK].reshape(B, S, H * DK)
    v3 = proj[:, 2 * H * DK:2 * H * DK + DK].reshape(B, S, DK)

    # Transpose K once for ALL heads; per-head slices below are 8-aligned
    # sublane views (no per-head transposes).
    kT = jnp.transpose(k3, (0, 2, 1))                               # (B, H*DK, S)

    attn_sum = None
    for h in range(H):                                              # H=4, static unroll
        qh = q3[:, :, h * DK:(h + 1) * DK]                          # (B, S, DK)
        kTh = kT[:, h * DK:(h + 1) * DK, :]                         # (B, DK, S)
        s = jnp.einsum('bqd,bdk->bqk', qh, kTh,
                       preferred_element_type=jnp.float32)          # (B, S, S)
        m = jnp.max(s, axis=-1, keepdims=True)
        e = jnp.exp(s - m)
        a = e / jnp.sum(e, axis=-1, keepdims=True)                  # exact softmax
        # Direct lane-offset store of this head's attention map (no concats).
        out_ref[:, :, D + h * S:D + (h + 1) * S] = a
        attn_sum = a if attn_sum is None else attn_sum + a          # (B, S, S)

    # Shared value: mean_h(attn_h @ V) == (sum_h attn_h) @ V * (1/H); the 1/H is
    # folded into the output projection block of the slab.
    ctx = jnp.einsum('bqk,bkd->bqd', attn_sum, v3,
                     preferred_element_type=jnp.float32)            # (B, S, DK)
    ow = w[OW_ROW:OW_ROW + DK, 0:D]                                 # (DK, D), *1/H
    out = jnp.dot(ctx.reshape(B * S, DK), ow,
                  preferred_element_type=jnp.float32)               # (B*S, D)
    out_ref[:, :, 0:D] = out.reshape(B, S, D)

    # TODO(synk): dropout has p=0.0 (identity) and mask=None in this config.


def pack_param_slab(params):
    """Host-side fusion of all weights/biases into one (128,128) slab."""
    H, D, DK = params["q_w"].shape
    scale = 1.0 / math.sqrt(DK)

    qw_f = (params["q_w"] * scale).transpose(1, 0, 2).reshape(D, H * DK)
    qb_f = (params["q_b"] * scale).reshape(H * DK)
    kw_f = params["k_w"].transpose(1, 0, 2).reshape(D, H * DK)
    kb_f = params["k_b"].reshape(H * DK)
    vw = params["v_w"]                                              # (D, DK)
    vb = params["v_b"].reshape(DK)
    ow_s = params["out_w"] * (1.0 / H)                              # (DK, D)

    w = jnp.zeros((K_PAD, K_PAD), jnp.float32)
    w = w.at[0:D, 0:H * DK].set(qw_f)
    w = w.at[D:2 * D, H * DK:2 * H * DK].set(kw_f)
    w = w.at[2 * D:3 * D, 2 * H * DK:2 * H * DK + DK].set(vw)
    w = w.at[BIAS_ROW, 0:2 * H * DK + DK].set(jnp.concatenate([qb_f, kb_f, vb]))
    # Output projection lives in rows that only see zero activation columns.
    w = w.at[OW_ROW:OW_ROW + DK, 0:D].set(ow_s)
    return w


def mha_forward(xq, xk, xv, params):
    B, S, D = xq.shape
    H, _, DK = params["q_w"].shape

    w_slab = pack_param_slab(params)                                # (128, 128)

    # Augment & lane-pad the activations: [xq | xk | xv | 1 | zeros] -> 128 lanes.
    ones = jnp.ones((B, S, 1), jnp.float32)
    zpad = jnp.zeros((B, S, K_PAD - 3 * D - 1), jnp.float32)
    x_aug = jnp.concatenate([xq, xk, xv, ones, zpad], axis=-1)      # (B, S, 128)

    vmem = pl.BlockSpec(memory_space=pltpu.MemorySpace.VMEM)
    combined = pl.pallas_call(
        mha_kernel,
        in_specs=[vmem, vmem],
        out_specs=vmem,
        out_shape=jax.ShapeDtypeStruct((B, S, D + H * S), jnp.float32),
    )(x_aug, w_slab)

    out = combined[:, :, :D]
    # (B, S, H*S) -> (B, Sq, n_head, Sk): PyTorch stacking convention, pure reshape.
    attn = combined[:, :, D:].reshape(B, S, H, S)
    return out, attn


def mha_reference(xq, xk, xv, params):
    """Pure-JAX reference mirroring the PyTorch forward (unfused params)."""
    value = xv @ params["v_w"] + params["v_b"][0]                   # (B, S, DK)
    heads, attns = [], []
    for h in range(N_HEAD):
        q = xq @ params["q_w"][h] + params["q_b"][h]
        k = xk @ params["k_w"][h] + params["k_b"][h]
        scores = jnp.einsum("bqd,bkd->bqk", q, k) / math.sqrt(D_K)
        attn = jax.nn.softmax(scores, axis=-1)
        attns.append(attn)
        heads.append(jnp.einsum("bqk,bkd->bqd", attn, value))
    heads_t = jnp.stack(heads, axis=2)                              # (B, S, H, DK)
    attns_t = jnp.stack(attns, axis=2)                              # (B, S, H, S)
    out = jnp.mean(heads_t, axis=2) @ params["out_w"]
    return out, attns_t


def init_params(key):
    ks = jax.random.split(key, 7)
    scale = 0.1
    return {
        "q_w": scale * jax.random.normal(ks[0], (N_HEAD, D_MODEL, D_K), jnp.float32),
        "q_b": scale * jax.random.normal(ks[1], (N_HEAD, D_K), jnp.float32),
        "k_w": scale * jax.random.normal(ks[2], (N_HEAD, D_MODEL, D_K), jnp.float32),
        "k_b": scale * jax.random.normal(ks[3], (N_HEAD, D_K), jnp.float32),
        "v_w": scale * jax.random.normal(ks[4], (D_MODEL, D_K), jnp.float32),
        "v_b": scale * jax.random.normal(ks[5], (1, D_K), jnp.float32),
        "out_w": scale * jax.random.normal(ks[6], (D_K, D_MODEL), jnp.float32),
    }


if __name__ == "__main__":
    key = jax.random.PRNGKey(0)
    kp, kq, kk, kv = jax.random.split(key, 4)

    params = init_params(kp)
    x_query = jax.random.normal(kq, (BATCH, SEQ, D_MODEL), jnp.float32)
    x_key = jax.random.normal(kk, (BATCH, SEQ, D_MODEL), jnp.float32)
    x_value = jax.random.normal(kv, (BATCH, SEQ, D_MODEL), jnp.float32)

    out, attns = mha_forward(x_query, x_key, x_value, params)
    jax.block_until_ready((out, attns))

    ref_out, ref_attns = mha_reference(x_query, x_key, x_value, params)
    assert out.shape == (BATCH, SEQ, D_MODEL)
    assert attns.shape == (BATCH, SEQ, N_HEAD, SEQ)
    assert jnp.allclose(out, ref_out, atol=1e-3, rtol=1e-3)
    assert jnp.allclose(attns, ref_attns, atol=1e-3, rtol=1e-3)

    print("KERNEL_OK")
</pallas_src>

<mosaic_0001>
module attributes {stable_mosaic.version = 11 : i64} {
  func.func @mha_kernel(%arg0: memref<2x8x128xf32, #tpu.memory_space<vmem>>, %arg1: memref<128x128xf32, #tpu.memory_space<vmem>>, %arg2: memref<2x8x64xf32, #tpu.memory_space<vmem>>) attributes {dimension_semantics = [], scalar_prefetch = 0 : i64, scratch_operands = 0 : i64, tpu.core_type = #tpu.core_type<tc>} {
    %c0 = arith.constant 0 : index
    %c0_0 = arith.constant 0 : index
    %c0_1 = arith.constant 0 : index
    %0 = vector.load %arg0[%c0, %c0_0, %c0_1] : memref<2x8x128xf32, #tpu.memory_space<vmem>>, vector<2x8x128xf32>
    %1 = vector.shape_cast %0 : vector<2x8x128xf32> to vector<16x128xf32>
    %c0_2 = arith.constant 0 : index
    %c0_3 = arith.constant 0 : index
    %2 = vector.load %arg1[%c0_2, %c0_3] : memref<128x128xf32, #tpu.memory_space<vmem>>, vector<128x128xf32>
    %cst = arith.constant dense<0.000000e+00> : vector<16x128xf32>
    %3 = tpu.matmul %1, %2, %cst {dimension_numbers = #tpu.dot_dimension_numbers<[1], [0], [0], [1], [0, 0, 1, 1], [], []>} : vector<16x128xf32>, vector<128x128xf32>, vector<16x128xf32> -> vector<16x128xf32>
    %4 = vector.extract_strided_slice %3 {offsets = [0, 0], sizes = [16, 32], strides = [1, 1]} : vector<16x128xf32> to vector<16x32xf32>
    %5 = vector.shape_cast %4 : vector<16x32xf32> to vector<2x8x32xf32>
    %6 = vector.extract_strided_slice %3 {offsets = [0, 32], sizes = [16, 32], strides = [1, 1]} : vector<16x128xf32> to vector<16x32xf32>
    %7 = vector.shape_cast %6 : vector<16x32xf32> to vector<2x8x32xf32>
    %8 = vector.extract_strided_slice %3 {offsets = [0, 64], sizes = [16, 8], strides = [1, 1]} : vector<16x128xf32> to vector<16x8xf32>
    %9 = vector.shape_cast %8 : vector<16x8xf32> to vector<2x8x8xf32>
    %10 = tpu.transpose %7, [0, 2, 1] : vector<2x8x32xf32> -> vector<2x32x8xf32>
    %11 = vector.extract_strided_slice %5 {offsets = [0, 0, 0], sizes = [2, 8, 8], strides = [1, 1, 1]} : vector<2x8x32xf32> to vector<2x8x8xf32>
    %12 = vector.extract_strided_slice %10 {offsets = [0, 0, 0], sizes = [2, 8, 8], strides = [1, 1, 1]} : vector<2x32x8xf32> to vector<2x8x8xf32>
    "tpu.trace_start"() <{level = 10 : i32, message = "bqd,bdk->bqk"}> : () -> ()
    %cst_4 = arith.constant dense<0.000000e+00> : vector<2x8x8xf32>
    %13 = tpu.matmul %11, %12, %cst_4 {dimension_numbers = #tpu.dot_dimension_numbers<[2], [1], [1], [2], [0, 0, 0, 1, 1, 2], [0], [0]>} : vector<2x8x8xf32>, vector<2x8x8xf32>, vector<2x8x8xf32> -> vector<2x8x8xf32>
    "tpu.trace_stop"() : () -> ()
    %cst_5 = arith.constant dense<0xFF800000> : vector<2x8xf32>
    %14 = vector.multi_reduction <maximumf>, %13, %cst_5 [2] : vector<2x8x8xf32> to vector<2x8xf32>
    %15 = vector.shape_cast %14 : vector<2x8xf32> to vector<2x8x1xf32>
    %16 = vector.broadcast %15 : vector<2x8x1xf32> to vector<2x8x8xf32>
    %17 = arith.subf %13, %16 : vector<2x8x8xf32>
    %18 = math.exp %17 : vector<2x8x8xf32>
    %cst_6 = arith.constant dense<0.000000e+00> : vector<2x8xf32>
    %19 = vector.multi_reduction <add>, %18, %cst_6 [2] : vector<2x8x8xf32> to vector<2x8xf32>
    %20 = vector.shape_cast %19 : vector<2x8xf32> to vector<2x8x1xf32>
    %21 = vector.broadcast %20 : vector<2x8x1xf32> to vector<2x8x8xf32>
    %22 = arith.divf %18, %21 : vector<2x8x8xf32>
    %c0_7 = arith.constant 0 : index
    %c0_8 = arith.constant 0 : index
    %c32 = arith.constant 32 : index
    %23 = vector.load %arg2[%c0_7, %c0_8, %c32] : memref<2x8x64xf32, #tpu.memory_space<vmem>>, vector<2x8x8xf32>
    tpu.vector_store %arg2[%c0_7, %c0_8, %c32], %22 {strides = array<i32>} : memref<2x8x64xf32, #tpu.memory_space<vmem>>, vector<2x8x8xf32>,
    %24 = vector.extract_strided_slice %5 {offsets = [0, 0, 8], sizes = [2, 8, 8], strides = [1, 1, 1]} : vector<2x8x32xf32> to vector<2x8x8xf32>
    %25 = vector.extract_strided_slice %10 {offsets = [0, 8, 0], sizes = [2, 8, 8], strides = [1, 1, 1]} : vector<2x32x8xf32> to vector<2x8x8xf32>
    "tpu.trace_start"() <{level = 10 : i32, message = "bqd,bdk->bqk"}> : () -> ()
    %cst_9 = arith.constant dense<0.000000e+00> : vector<2x8x8xf32>
    %26 = tpu.matmul %24, %25, %cst_9 {dimension_numbers = #tpu.dot_dimension_numbers<[2], [1], [1], [2], [0, 0, 0, 1, 1, 2], [0], [0]>} : vector<2x8x8xf32>, vector<2x8x8xf32>, vector<2x8x8xf32> -> vector<2x8x8xf32>
    "tpu.trace_stop"() : () -> ()
    %cst_10 = arith.constant dense<0xFF800000> : vector<2x8xf32>
    %27 = vector.multi_reduction <maximumf>, %26, %cst_10 [2] : vector<2x8x8xf32> to vector<2x8xf32>
    %28 = vector.shape_cast %27 : vector<2x8xf32> to vector<2x8x1xf32>
    %29 = vector.broadcast %28 : vector<2x8x1xf32> to vector<2x8x8xf32>
    %30 = arith.subf %26, %29 : vector<2x8x8xf32>
    %31 = math.exp %30 : vector<2x8x8xf32>
    %cst_11 = arith.constant dense<0.000000e+00> : vector<2x8xf32>
    %32 = vector.multi_reduction <add>, %31, %cst_11 [2] : vector<2x8x8xf32> to vector<2x8xf32>
    %33 = vector.shape_cast %32 : vector<2x8xf32> to vector<2x8x1xf32>
    %34 = vector.broadcast %33 : vector<2x8x1xf32> to vector<2x8x8xf32>
    %35 = arith.divf %31, %34 : vector<2x8x8xf32>
    %c0_12 = arith.constant 0 : index
    %c0_13 = arith.constant 0 : index
    %c40 = arith.constant 40 : index
    %36 = vector.load %arg2[%c0_12, %c0_13, %c40] : memref<2x8x64xf32, #tpu.memory_space<vmem>>, vector<2x8x8xf32>
    tpu.vector_store %arg2[%c0_12, %c0_13, %c40], %35 {strides = array<i32>} : memref<2x8x64xf32, #tpu.memory_space<vmem>>, vector<2x8x8xf32>,
    %37 = arith.addf %22, %35 : vector<2x8x8xf32>
    %38 = vector.extract_strided_slice %5 {offsets = [0, 0, 16], sizes = [2, 8, 8], strides = [1, 1, 1]} : vector<2x8x32xf32> to vector<2x8x8xf32>
    %39 = vector.extract_strided_slice %10 {offsets = [0, 16, 0], sizes = [2, 8, 8], strides = [1, 1, 1]} : vector<2x32x8xf32> to vector<2x8x8xf32>
    "tpu.trace_start"() <{level = 10 : i32, message = "bqd,bdk->bqk"}> : () -> ()
    %cst_14 = arith.constant dense<0.000000e+00> : vector<2x8x8xf32>
    %40 = tpu.matmul %38, %39, %cst_14 {dimension_numbers = #tpu.dot_dimension_numbers<[2], [1], [1], [2], [0, 0, 0, 1, 1, 2], [0], [0]>} : vector<2x8x8xf32>, vector<2x8x8xf32>, vector<2x8x8xf32> -> vector<2x8x8xf32>
    "tpu.trace_stop"() : () -> ()
    %cst_15 = arith.constant dense<0xFF800000> : vector<2x8xf32>
    %41 = vector.multi_reduction <maximumf>, %40, %cst_15 [2] : vector<2x8x8xf32> to vector<2x8xf32>
    %42 = vector.shape_cast %41 : vector<2x8xf32> to vector<2x8x1xf32>
    %43 = vector.broadcast %42 : vector<2x8x1xf32> to vector<2x8x8xf32>
    %44 = arith.subf %40, %43 : vector<2x8x8xf32>
    %45 = math.exp %44 : vector<2x8x8xf32>
    %cst_16 = arith.constant dense<0.000000e+00> : vector<2x8xf32>
    %46 = vector.multi_reduction <add>, %45, %cst_16 [2] : vector<2x8x8xf32> to vector<2x8xf32>
    %47 = vector.shape_cast %46 : vector<2x8xf32> to vector<2x8x1xf32>
    %48 = vector.broadcast %47 : vector<2x8x1xf32> to vector<2x8x8xf32>
    %49 = arith.divf %45, %48 : vector<2x8x8xf32>
    %c0_17 = arith.constant 0 : index
    %c0_18 = arith.constant 0 : index
    %c48 = arith.constant 48 : index
    %50 = vector.load %arg2[%c0_17, %c0_18, %c48] : memref<2x8x64xf32, #tpu.memory_space<vmem>>, vector<2x8x8xf32>
    tpu.vector_store %arg2[%c0_17, %c0_18, %c48], %49 {strides = array<i32>} : memref<2x8x64xf32, #tpu.memory_space<vmem>>, vector<2x8x8xf32>,
    %51 = arith.addf %37, %49 : vector<2x8x8xf32>
    %52 = vector.extract_strided_slice %5 {offsets = [0, 0, 24], sizes = [2, 8, 8], strides = [1, 1, 1]} : vector<2x8x32xf32> to vector<2x8x8xf32>
    %53 = vector.extract_strided_slice %10 {offsets = [0, 24, 0], sizes = [2, 8, 8], strides = [1, 1, 1]} : vector<2x32x8xf32> to vector<2x8x8xf32>
    "tpu.trace_start"() <{level = 10 : i32, message = "bqd,bdk->bqk"}> : () -> ()
    %cst_19 = arith.constant dense<0.000000e+00> : vector<2x8x8xf32>
    %54 = tpu.matmul %52, %53, %cst_19 {dimension_numbers = #tpu.dot_dimension_numbers<[2], [1], [1], [2], [0, 0, 0, 1, 1, 2], [0], [0]>} : vector<2x8x8xf32>, vector<2x8x8xf32>, vector<2x8x8xf32> -> vector<2x8x8xf32>
    "tpu.trace_stop"() : () -> ()
    %cst_20 = arith.constant dense<0xFF800000> : vector<2x8xf32>
    %55 = vector.multi_reduction <maximumf>, %54, %cst_20 [2] : vector<2x8x8xf32> to vector<2x8xf32>
    %56 = vector.shape_cast %55 : vector<2x8xf32> to vector<2x8x1xf32>
    %57 = vector.broadcast %56 : vector<2x8x1xf32> to vector<2x8x8xf32>
    %58 = arith.subf %54, %57 : vector<2x8x8xf32>
    %59 = math.exp %58 : vector<2x8x8xf32>
    %cst_21 = arith.constant dense<0.000000e+00> : vector<2x8xf32>
    %60 = vector.multi_reduction <add>, %59, %cst_21 [2] : vector<2x8x8xf32> to vector<2x8xf32>
    %61 = vector.shape_cast %60 : vector<2x8xf32> to vector<2x8x1xf32>
    %62 = vector.broadcast %61 : vector<2x8x1xf32> to vector<2x8x8xf32>
    %63 = arith.divf %59, %62 : vector<2x8x8xf32>
    %c0_22 = arith.constant 0 : index
    %c0_23 = arith.constant 0 : index
    %c56 = arith.constant 56 : index
    %64 = vector.load %arg2[%c0_22, %c0_23, %c56] : memref<2x8x64xf32, #tpu.memory_space<vmem>>, vector<2x8x8xf32>
    tpu.vector_store %arg2[%c0_22, %c0_23, %c56], %63 {strides = array<i32>} : memref<2x8x64xf32, #tpu.memory_space<vmem>>, vector<2x8x8xf32>,
    %65 = arith.addf %51, %63 : vector<2x8x8xf32>
    "tpu.trace_start"() <{level = 10 : i32, message = "bqk,bkd->bqd"}> : () -> ()
    %cst_24 = arith.constant dense<0.000000e+00> : vector<2x8x8xf32>
    %66 = tpu.matmul %65, %9, %cst_24 {dimension_numbers = #tpu.dot_dimension_numbers<[2], [1], [1], [2], [0, 0, 0, 1, 1, 2], [0], [0]>} : vector<2x8x8xf32>, vector<2x8x8xf32>, vector<2x8x8xf32> -> vector<2x8x8xf32>
    "tpu.trace_stop"() : () -> ()
    %67 = vector.extract_strided_slice %2 {offsets = [112, 0], sizes = [8, 32], strides = [1, 1]} : vector<128x128xf32> to vector<8x32xf32>
    %68 = vector.shape_cast %66 : vector<2x8x8xf32> to vector<16x8xf32>
    %cst_25 = arith.constant dense<0.000000e+00> : vector<16x32xf32>
    %69 = tpu.matmul %68, %67, %cst_25 {dimension_numbers = #tpu.dot_dimension_numbers<[1], [0], [0], [1], [0, 0, 1, 1], [], []>} : vector<16x8xf32>, vector<8x32xf32>, vector<16x32xf32> -> vector<16x32xf32>
    %70 = vector.shape_cast %69 : vector<16x32xf32> to vector<2x8x32xf32>
    %c0_26 = arith.constant 0 : index
    %c0_27 = arith.constant 0 : index
    %c0_28 = arith.constant 0 : index
    %71 = vector.load %arg2[%c0_26, %c0_27, %c0_28] : memref<2x8x64xf32, #tpu.memory_space<vmem>>, vector<2x8x32xf32>
    tpu.vector_store %arg2[%c0_26, %c0_27, %c0_28], %70 {strides = array<i32>} : memref<2x8x64xf32, #tpu.memory_space<vmem>>, vector<2x8x32xf32>,
    return
  }
}

</mosaic_0001>

<llo_original>
// kernel: tpu_custom_call.1
$region0: #{tpu_custom_call.1}
  #allocation0 [shape = 'u32[]', space=smem, size = 0x4, offset = 0x4, fixed_abs, tag = 'smem constant byte address 0x4 - core index']
  #allocation1 [shape = 'u32[72,128]{1,0:T(1,128)}', space=vmem, size = 0x9000, scoped, tag = 'internal scratch']
  %s0 = inlined_call_operand.hbm [shape: f32[2,8,128], index: 0, kind: input, shape index: {}]
  %s1 = inlined_call_operand.hbm [shape: f32[128,128], index: 1, kind: input, shape index: {}]
  %s2 = inlined_call_operand.hbm [shape: f32[2,8,64], index: 2, kind: output, shape index: {}]
  %s3 = sld [smem:[#allocation0]]
  $region26: #{tpu_custom_call.1} parent=0
    _
  %s5 = ssub.s32 1, %s3
  %s6 = scalar_select 0, %s5, %s3
  $region1: #{tpu_custom_call.1} parent=0
    #allocation2 [shape = 'u8[8192]{0}', space=vmem, size = 0x2000, scoped, tag = 'input window, operand 0, single buffered']
    #allocation3 [shape = 's32[1]{0}', space=sflag, size = 0x4, scoped, tag = 'scoped memory for tpu_custom_call.1']
    #allocation4 [shape = 's32[1]{0}', space=sflag, size = 0x4, scoped, tag = 'scoped memory for tpu_custom_call.1']
    #allocation5 [shape = 'u8[65536]{0}', space=vmem, size = 0x10000, scoped, tag = 'input window, operand 1, single buffered']
    #allocation6 [shape = 's32[1]{0}', space=sflag, size = 0x4, scoped, tag = 'scoped memory for tpu_custom_call.1']
    #allocation7 [shape = 'u8[8192]{0}', space=vmem, size = 0x2000, scoped, tag = 'output window, operand 0, single buffered']
    %7 = vsyncpa [#allocation3], 0
    %8 = vsyncpa [#allocation6], 0
    %9 = vsyncpa [#allocation4], 0
    // Predicated region
    $region2: #{tpu_custom_call.1} parent=1 // pred_check
      _
    $region3: #{tpu_custom_call.1} parent=1 // pred_check_branch
      %11 = sbr.rel (0) target = $region5
    $region4: #{tpu_custom_call.1} parent=1 // pred_region
      %13 = vsyncadd [#allocation3], 0
      %s14 = sshll.u32 %s0, 4
      %s15 = int_to_ptr.hbm [resolvable:$true] %s14
      %s16 = sshll.u32 [#allocation2], 4
      %s17 = int_to_ptr.vmem [resolvable:$true] %s16
      %22 = dma.hbm_to_vmem [thread:$0]  %s15, 256, %s17, [#allocation3], 128, 128, 8
    $region5: #{tpu_custom_call.1} parent=1 // pred_fallthru
      _
    // Predicated region
    $region6: #{tpu_custom_call.1} parent=1 // pred_check
      _
    $region7: #{tpu_custom_call.1} parent=1 // pred_check_branch
      %24 = sbr.rel (0) target = $region9
    $region8: #{tpu_custom_call.1} parent=1 // pred_region
      %26 = vsyncadd [#allocation6], 0
      %s27 = sshll.u32 %s1, 4
      %s28 = int_to_ptr.hbm [resolvable:$true] %s27
      %s29 = sshll.u32 [#allocation5], 4
      %s30 = int_to_ptr.vmem [resolvable:$true] %s29
      %35 = dma.hbm_to_vmem [thread:$0]  %s28, 2048, %s30, [#allocation6], 128, 128, 8
    $region9: #{tpu_custom_call.1} parent=1 // pred_fallthru
      _
    // Predicated region
    $region10: #{tpu_custom_call.1} parent=1 // pred_check
      _
    $region11: #{tpu_custom_call.1} parent=1 // pred_check_branch
      %37 = sbr.rel (0) target = $region13
    $region12: #{tpu_custom_call.1} parent=1 // pred_region
      %39 = dma.done [#allocation3], 256
    $region13: #{tpu_custom_call.1} parent=1 // pred_fallthru
      _
    // Predicated region
    $region14: #{tpu_custom_call.1} parent=1 // pred_check
      _
    $region15: #{tpu_custom_call.1} parent=1 // pred_check_branch
      %41 = sbr.rel (0) target = $region17
    $region16: #{tpu_custom_call.1} parent=1 // pred_region
      %43 = dma.done [#allocation6], 2048
    $region17: #{tpu_custom_call.1} parent=1 // pred_fallthru
      _
    %v44 = vld [vmem:[#allocation2] sm:$0xff]
    %v45 = vld [vmem:[#allocation2 + $0x8] sm:$0xff]
    %v46 = vld [vmem:[#allocation5] sm:$0xff]
    %v47 = vld [vmem:[#allocation5 + $0x8] sm:$0xff]
    %v48 = vld [vmem:[#allocation5 + $0x10] sm:$0xff]
    %v49 = vld [vmem:[#allocation5 + $0x18] sm:$0xff]
    %v50 = vld [vmem:[#allocation5 + $0x20] sm:$0xff]
    %v51 = vld [vmem:[#allocation5 + $0x28] sm:$0xff]
    %v52 = vld [vmem:[#allocation5 + $0x30] sm:$0xff]
    %v53 = vld [vmem:[#allocation5 + $0x38] sm:$0xff]
    %v54 = vld [vmem:[#allocation5 + $0x40] sm:$0xff]
    %v55 = vld [vmem:[#allocation5 + $0x48] sm:$0xff]
    %v56 = vld [vmem:[#allocation5 + $0x50] sm:$0xff]
    %v57 = vld [vmem:[#allocation5 + $0x58] sm:$0xff]
    %v58 = vld [vmem:[#allocation5 + $0x60] sm:$0xff]
    %v59 = vld [vmem:[#allocation5 + $0x68] sm:$0xff]
    %v60 = vld [vmem:[#allocation5 + $0x70] sm:$0xff]
    %v61 = vld [vmem:[#allocation5 + $0x78] sm:$0xff]
    %62 = vmatpush.msra.mxu0 %v61
    %63 = vmatpush.msra.mxu0 %v60
    %64 = vmatpush.msra.mxu0 %v59
    %65 = vmatpush.msra.mxu0 %v58
    %66 = vmatpush.msra.mxu0 %v57
    %67 = vmatpush.msra.mxu0 %v56
    %68 = vmatpush.msra.mxu0 %v55
    %69 = vmatpush.msra.mxu0 %v54
    %70 = vmatpush.msra.mxu0 %v53
    %71 = vmatpush.msra.mxu0 %v52
    %72 = vmatpush.msra.mxu0 %v51
    %73 = vmatpush.msra.mxu0 %v50
    %74 = vmatpush.msra.mxu0 %v49
    %75 = vmatpush.msra.mxu0 %v48
    %76 = vmatpush.msra.mxu0 %v47
    %77 = vmatpush.msra.mxu0 %v46
    %78 = vmatmul.f32.gmra.mxu0 %v44
    %v79 = vpop.f32.mrf.mxu0
    %v80 = vadd.f32 0.0, %v79
    %81 = vmatmul.f32.gmra.mxu0 %v45
    %v82 = vpop.f32.mrf.mxu0
    %v83 = vadd.f32 0.0, %v82
    %84 = vdwg.mxu0
    %86 = vrot.lane.b32.xlu0 %v80, 96
    %v87 = vpop.permute.xlu0 %86
    %vm88 = vcmask 64512
    %v89 = vsel %vm88, %v80, 0
    %v91 = vsel %vm88, %v87, 0
    %93 = vmatpush.xpose.msra.mxu0 0.0
    %94 = vmatpush.xpose.msra.mxu0 0.0
    %95 = vmatpush.xpose.msra.mxu0 0.0
    %96 = vmatpush.xpose.msra.mxu0 0.0
    %97 = vmatpush.xpose.msra.mxu0 0.0
    %98 = vmatpush.xpose.msra.mxu0 0.0
    %99 = vmatpush.xpose.msra.mxu0 0.0
    %100 = vmatpush.xpose.msra.mxu0 0.0
    %101 = vmatpush.xpose.msra.mxu0 0.0
    %102 = vmatpush.xpose.msra.mxu0 0.0
    %103 = vmatpush.xpose.msra.mxu0 0.0
    %104 = vmatpush.xpose.msra.mxu0 0.0
    %105 = vmatpush.xpose.msra.mxu0 0.0
    %106 = vmatpush.xpose.msra.mxu0 0.0
    %107 = vmatpush.xpose.msra.mxu0 0.0
    %108 = vmatpush.xpose.msra.mxu0 %v91
    %109 = vmatmul.f32.gmra.mxu0 %v89
    %v110 = vpop.f32.mrf.mxu0
    %v111 = vadd.f32 0.0, %v110
    %112 = vdwg.mxu0
    %114 = vrot.lane.b32.xlu0 %v83, 96
    %v115 = vpop.permute.xlu0 %114
    %v116 = vsel %vm88, %v83, 0
    %v118 = vsel %vm88, %v115, 0
    %120 = vmatpush.xpose.msra.mxu0 0.0
    %121 = vmatpush.xpose.msra.mxu0 0.0
    %122 = vmatpush.xpose.msra.mxu0 0.0
    %123 = vmatpush.xpose.msra.mxu0 0.0
    %124 = vmatpush.xpose.msra.mxu0 0.0
    %125 = vmatpush.xpose.msra.mxu0 0.0
    %126 = vmatpush.xpose.msra.mxu0 0.0
    %127 = vmatpush.xpose.msra.mxu0 0.0
    %128 = vmatpush.xpose.msra.mxu0 0.0
    %129 = vmatpush.xpose.msra.mxu0 0.0
    %130 = vmatpush.xpose.msra.mxu0 0.0
    %131 = vmatpush.xpose.msra.mxu0 0.0
    %132 = vmatpush.xpose.msra.mxu0 0.0
    %133 = vmatpush.xpose.msra.mxu0 0.0
    %134 = vmatpush.xpose.msra.mxu0 0.0
    %135 = vmatpush.xpose.msra.mxu0 %v118
    %136 = vmatmul.f32.gmra.mxu0 %v116
    %v137 = vpop.f32.mrf.mxu0
    %v138 = vadd.f32 0.0, %v137
    %139 = vdwg.mxu0
    %v140 = vsel %vm88, %v111, -inf
    %141 = vmax.xlane.f32.xlu0 %v140
    %v142 = vpop.xlane.xlu0 %141
    %v143 = vsel %vm88, %v138, -inf
    %144 = vmax.xlane.f32.xlu0 %v143
    %v145 = vpop.xlane.xlu0 %144
    %v146 = vsub.f32 %v111, %v142
    %v147 = vsub.f32 %v138, %v145
    %v148 = vmul.f32 %v146, 1.442695
    %v149 = vpow.pop %v148
    %v150 = vmul.f32 %v147, 1.442695
    %v151 = vpow.pop %v150
    %v152 = vsel %vm88, %v149, 0.0
    %153 = vadd.xlane.f32.xlu0 %v152
    %v154 = vpop.xlane.xlu0 %153
    %v155 = vsel %vm88, %v151, 0.0
    %156 = vadd.xlane.f32.xlu0 %v155
    %v157 = vpop.xlane.xlu0 %156
    %v158 = vrcp.pop %v154
    %v159 = vmul.f32 %v154, %v158
    %v160 = vsub.f32 1.0, %v159
    %v161 = vmul.f32 %v158, %v160
    %v162 = vadd.f32 %v158, %v161
    %vm163 = vweird.f32 %v154
    %vm164 = vweird.f32 %v158
    %vm165 = vmor %vm163, %vm164
    %v166 = vsel %vm165, %v158, %v162
    %v167 = vand.u32 2147483647, %v154
    %vm168 = vcmp.eq.f32.partialorder %v167, 8.507059e+37
    %v169 = vand.u32 %v154, 2147483648
    %v170 = vor.u32 1.1754944e-38, %v169
    %v171 = vsel %vm168, %v170, %v166
    %v172 = vmul.f32 %v149, %v171
    %v173 = vrcp.pop %v157
    %v174 = vmul.f32 %v157, %v173
    %v175 = vsub.f32 1.0, %v174
    %v176 = vmul.f32 %v173, %v175
    %v177 = vadd.f32 %v173, %v176
    %vm178 = vweird.f32 %v157
    %vm179 = vweird.f32 %v173
    %vm180 = vmor %vm178, %vm179
    %v181 = vsel %vm180, %v173, %v177
    %v182 = vand.u32 2147483647, %v157
    %vm183 = vcmp.eq.f32.partialorder %v182, 8.507059e+37
    %v184 = vand.u32 %v157, 2147483648
    %v185 = vor.u32 1.1754944e-38, %v184
    %v186 = vsel %vm183, %v185, %v181
    %v187 = vmul.f32 %v151, %v186
    %190 = vrot.lane.b32.xlu0 %v172, 32
    %v191 = vpop.permute.xlu0 %190
    %192 = vrot.lane.b32.xlu0 %v187, 32
    %v193 = vpop.permute.xlu0 %192
    %vm196 = vcmask 326912
    %197 = vst.msk [vmem:[#allocation7] sm:$0xff] %vm196, %v191
    %198 = vst.msk [vmem:[#allocation7 + $0x8] sm:$0xff] %vm196, %v193
    %199 = vrot.lane.b32.xlu0 %v80, 120
    %v200 = vpop.permute.xlu0 %199
    %201 = vrot.lane.b32.xlu0 %v80, 88
    %v202 = vpop.permute.xlu0 %201
    %v203 = vsel %vm88, %v200, 0
    %v205 = vsel %vm88, %v202, 0
    %207 = vmatpush.xpose.msra.mxu0 0.0
    %208 = vmatpush.xpose.msra.mxu0 0.0
    %209 = vmatpush.xpose.msra.mxu0 0.0
    %210 = vmatpush.xpose.msra.mxu0 0.0
    %211 = vmatpush.xpose.msra.mxu0 0.0
    %212 = vmatpush.xpose.msra.mxu0 0.0
    %213 = vmatpush.xpose.msra.mxu0 0.0
    %214 = vmatpush.xpose.msra.mxu0 0.0
    %215 = vmatpush.xpose.msra.mxu0 0.0
    %216 = vmatpush.xpose.msra.mxu0 0.0
    %217 = vmatpush.xpose.msra.mxu0 0.0
    %218 = vmatpush.xpose.msra.mxu0 0.0
    %219 = vmatpush.xpose.msra.mxu0 0.0
    %220 = vmatpush.xpose.msra.mxu0 0.0
    %221 = vmatpush.xpose.msra.mxu0 0.0
    %222 = vmatpush.xpose.msra.mxu0 %v205
    %223 = vmatmul.f32.gmra.mxu0 %v203
    %v224 = vpop.f32.mrf.mxu0
    %v225 = vadd.f32 0.0, %v224
    %226 = vdwg.mxu0
    %227 = vrot.lane.b32.xlu0 %v83, 120
    %v228 = vpop.permute.xlu0 %227
    %229 = vrot.lane.b32.xlu0 %v83, 88
    %v230 = vpop.permute.xlu0 %229
    %v231 = vsel %vm88, %v228, 0
    %v233 = vsel %vm88, %v230, 0
    %235 = vmatpush.xpose.msra.mxu0 0.0
    %236 = vmatpush.xpose.msra.mxu0 0.0
    %237 = vmatpush.xpose.msra.mxu0 0.0
    %238 = vmatpush.xpose.msra.mxu0 0.0
    %239 = vmatpush.xpose.msra.mxu0 0.0
    %240 = vmatpush.xpose.msra.mxu0 0.0
    %241 = vmatpush.xpose.msra.mxu0 0.0
    %242 = vmatpush.xpose.msra.mxu0 0.0
    %243 = vmatpush.xpose.msra.mxu0 0.0
    %244 = vmatpush.xpose.msra.mxu0 0.0
    %245 = vmatpush.xpose.msra.mxu0 0.0
    %246 = vmatpush.xpose.msra.mxu0 0.0
    %247 = vmatpush.xpose.msra.mxu0 0.0
    %248 = vmatpush.xpose.msra.mxu0 0.0
    %249 = vmatpush.xpose.msra.mxu0 0.0
    %250 = vmatpush.xpose.msra.mxu0 %v233
    %251 = vmatmul.f32.gmra.mxu0 %v231
    %v252 = vpop.f32.mrf.mxu0
    %v253 = vadd.f32 0.0, %v252
    %254 = vdwg.mxu0
    %v255 = vsel %vm88, %v225, -inf
    %256 = vmax.xlane.f32.xlu0 %v255
    %v257 = vpop.xlane.xlu0 %256
    %v258 = vsel %vm88, %v253, -inf
    %259 = vmax.xlane.f32.xlu0 %v258
    %v260 = vpop.xlane.xlu0 %259
    %v261 = vsub.f32 %v225, %v257
    %v262 = vsub.f32 %v253, %v260
    %v263 = vmul.f32 %v261, 1.442695
    %v264 = vpow.pop %v263
    %v265 = vmul.f32 %v262, 1.442695
    %v266 = vpow.pop %v265
    %v267 = vsel %vm88, %v264, 0.0
    %268 = vadd.xlane.f32.xlu0 %v267
    %v269 = vpop.xlane.xlu0 %268
    %v270 = vsel %vm88, %v266, 0.0
    %271 = vadd.xlane.f32.xlu0 %v270
    %v272 = vpop.xlane.xlu0 %271
    %v273 = vrcp.pop %v269
    %v274 = vmul.f32 %v269, %v273
    %v275 = vsub.f32 1.0, %v274
    %v276 = vmul.f32 %v273, %v275
    %v277 = vadd.f32 %v273, %v276
    %vm278 = vweird.f32 %v269
    %vm279 = vweird.f32 %v273
    %vm280 = vmor %vm278, %vm279
    %v281 = vsel %vm280, %v273, %v277
    %v282 = vand.u32 2147483647, %v269
    %vm283 = vcmp.eq.f32.partialorder %v282, 8.507059e+37
    %v284 = vand.u32 %v269, 2147483648
    %v285 = vor.u32 1.1754944e-38, %v284
    %v286 = vsel %vm283, %v285, %v281
    %v287 = vmul.f32 %v264, %v286
    %v288 = vrcp.pop %v272
    %v289 = vmul.f32 %v272, %v288
    %v290 = vsub.f32 1.0, %v289
    %v291 = vmul.f32 %v288, %v290
    %v292 = vadd.f32 %v288, %v291
    %vm293 = vweird.f32 %v272
    %vm294 = vweird.f32 %v288
    %vm295 = vmor %vm293, %vm294
    %v296 = vsel %vm295, %v288, %v292
    %v297 = vand.u32 2147483647, %v272
    %vm298 = vcmp.eq.f32.partialorder %v297, 8.507059e+37
    %v299 = vand.u32 %v272, 2147483648
    %v300 = vor.u32 1.1754944e-38, %v299
    %v301 = vsel %vm298, %v300, %v296
    %v302 = vmul.f32 %v266, %v301
    %305 = vrot.lane.b32.xlu0 %v287, 40
    %v306 = vpop.permute.xlu0 %305
    %307 = vrot.lane.b32.xlu0 %v302, 40
    %v308 = vpop.permute.xlu0 %307
    %vm311 = vcmask 392512
    %312 = vst.msk [vmem:[#allocation7] sm:$0xff] %vm311, %v306
    %313 = vst.msk [vmem:[#allocation7 + $0x8] sm:$0xff] %vm311, %v308
    %v314 = vadd.f32 %v172, %v287
    %v315 = vadd.f32 %v187, %v302
    %316 = vrot.lane.b32.xlu0 %v80, 112
    %v317 = vpop.permute.xlu0 %316
    %318 = vrot.lane.b32.xlu0 %v80, 80
    %v319 = vpop.permute.xlu0 %318
    %v320 = vsel %vm88, %v317, 0
    %v322 = vsel %vm88, %v319, 0
    %324 = vmatpush.xpose.msra.mxu0 0.0
    %325 = vmatpush.xpose.msra.mxu0 0.0
    %326 = vmatpush.xpose.msra.mxu0 0.0
    %327 = vmatpush.xpose.msra.mxu0 0.0
    %328 = vmatpush.xpose.msra.mxu0 0.0
    %329 = vmatpush.xpose.msra.mxu0 0.0
    %330 = vmatpush.xpose.msra.mxu0 0.0
    %331 = vmatpush.xpose.msra.mxu0 0.0
    %332 = vmatpush.xpose.msra.mxu0 0.0
    %333 = vmatpush.xpose.msra.mxu0 0.0
    %334 = vmatpush.xpose.msra.mxu0 0.0
    %335 = vmatpush.xpose.msra.mxu0 0.0
    %336 = vmatpush.xpose.msra.mxu0 0.0
    %337 = vmatpush.xpose.msra.mxu0 0.0
    %338 = vmatpush.xpose.msra.mxu0 0.0
    %339 = vmatpush.xpose.msra.mxu0 %v322
    %340 = vmatmul.f32.gmra.mxu0 %v320
    %v341 = vpop.f32.mrf.mxu0
    %v342 = vadd.f32 0.0, %v341
    %343 = vdwg.mxu0
    %344 = vrot.lane.b32.xlu0 %v83, 112
    %v345 = vpop.permute.xlu0 %344
    %346 = vrot.lane.b32.xlu0 %v83, 80
    %v347 = vpop.permute.xlu0 %346
    %v348 = vsel %vm88, %v345, 0
    %v350 = vsel %vm88, %v347, 0
    %352 = vmatpush.xpose.msra.mxu0 0.0
    %353 = vmatpush.xpose.msra.mxu0 0.0
    %354 = vmatpush.xpose.msra.mxu0 0.0
    %355 = vmatpush.xpose.msra.mxu0 0.0
    %356 = vmatpush.xpose.msra.mxu0 0.0
    %357 = vmatpush.xpose.msra.mxu0 0.0
    %358 = vmatpush.xpose.msra.mxu0 0.0
    %359 = vmatpush.xpose.msra.mxu0 0.0
    %360 = vmatpush.xpose.msra.mxu0 0.0
    %361 = vmatpush.xpose.msra.mxu0 0.0
    %362 = vmatpush.xpose.msra.mxu0 0.0
    %363 = vmatpush.xpose.msra.mxu0 0.0
    %364 = vmatpush.xpose.msra.mxu0 0.0
    %365 = vmatpush.xpose.msra.mxu0 0.0
    %366 = vmatpush.xpose.msra.mxu0 0.0
    %367 = vmatpush.xpose.msra.mxu0 %v350
    %368 = vmatmul.f32.gmra.mxu0 %v348
    %v369 = vpop.f32.mrf.mxu0
    %v370 = vadd.f32 0.0, %v369
    %371 = vdwg.mxu0
    %v372 = vsel %vm88, %v342, -inf
    %373 = vmax.xlane.f32.xlu0 %v372
    %v374 = vpop.xlane.xlu0 %373
    %v375 = vsel %vm88, %v370, -inf
    %376 = vmax.xlane.f32.xlu0 %v375
    %v377 = vpop.xlane.xlu0 %376
    %v378 = vsub.f32 %v342, %v374
    %v379 = vsub.f32 %v370, %v377
    %v380 = vmul.f32 %v378, 1.442695
    %v381 = vpow.pop %v380
    %v382 = vmul.f32 %v379, 1.442695
    %v383 = vpow.pop %v382
    %v384 = vsel %vm88, %v381, 0.0
    %385 = vadd.xlane.f32.xlu0 %v384
    %v386 = vpop.xlane.xlu0 %385
    %v387 = vsel %vm88, %v383, 0.0
    %388 = vadd.xlane.f32.xlu0 %v387
    %v389 = vpop.xlane.xlu0 %388
    %v390 = vrcp.pop %v386
    %v391 = vmul.f32 %v386, %v390
    %v392 = vsub.f32 1.0, %v391
    %v393 = vmul.f32 %v390, %v392
    %v394 = vadd.f32 %v390, %v393
    %vm395 = vweird.f32 %v386
    %vm396 = vweird.f32 %v390
    %vm397 = vmor %vm395, %vm396
    %v398 = vsel %vm397, %v390, %v394
    %v399 = vand.u32 2147483647, %v386
    %vm400 = vcmp.eq.f32.partialorder %v399, 8.507059e+37
    %v401 = vand.u32 %v386, 2147483648
    %v402 = vor.u32 1.1754944e-38, %v401
    %v403 = vsel %vm400, %v402, %v398
    %v404 = vmul.f32 %v381, %v403
    %v405 = vrcp.pop %v389
    %v406 = vmul.f32 %v389, %v405
    %v407 = vsub.f32 1.0, %v406
    %v408 = vmul.f32 %v405, %v407
    %v409 = vadd.f32 %v405, %v408
    %vm410 = vweird.f32 %v389
    %vm411 = vweird.f32 %v405
    %vm412 = vmor %vm410, %vm411
    %v413 = vsel %vm412, %v405, %v409
    %v414 = vand.u32 2147483647, %v389
    %vm415 = vcmp.eq.f32.partialorder %v414, 8.507059e+37
    %v416 = vand.u32 %v389, 2147483648
    %v417 = vor.u32 1.1754944e-38, %v416
    %v418 = vsel %vm415, %v417, %v413
    %v419 = vmul.f32 %v383, %v418
    %422 = vrot.lane.b32.xlu0 %v404, 48
    %v423 = vpop.permute.xlu0 %422
    %424 = vrot.lane.b32.xlu0 %v419, 48
    %v425 = vpop.permute.xlu0 %424
    %vm428 = vcmask 458112
    %429 = vst.msk [vmem:[#allocation7] sm:$0xff] %vm428, %v423
    %430 = vst.msk [vmem:[#allocation7 + $0x8] sm:$0xff] %vm428, %v425
    %v431 = vadd.f32 %v314, %v404
    %v432 = vadd.f32 %v315, %v419
    %433 = vrot.lane.b32.xlu0 %v80, 104
    %v434 = vpop.permute.xlu0 %433
    %435 = vrot.lane.b32.xlu0 %v80, 72
    %v436 = vpop.permute.xlu0 %435
    %v437 = vsel %vm88, %v434, 0
    %v439 = vsel %vm88, %v436, 0
    %441 = vmatpush.xpose.msra.mxu0 0.0
    %442 = vmatpush.xpose.msra.mxu0 0.0
    %443 = vmatpush.xpose.msra.mxu0 0.0
    %444 = vmatpush.xpose.msra.mxu0 0.0
    %445 = vmatpush.xpose.msra.mxu0 0.0
    %446 = vmatpush.xpose.msra.mxu0 0.0
    %447 = vmatpush.xpose.msra.mxu0 0.0
    %448 = vmatpush.xpose.msra.mxu0 0.0
    %449 = vmatpush.xpose.msra.mxu0 0.0
    %450 = vmatpush.xpose.msra.mxu0 0.0
    %451 = vmatpush.xpose.msra.mxu0 0.0
    %452 = vmatpush.xpose.msra.mxu0 0.0
    %453 = vmatpush.xpose.msra.mxu0 0.0
    %454 = vmatpush.xpose.msra.mxu0 0.0
    %455 = vmatpush.xpose.msra.mxu0 0.0
    %456 = vmatpush.xpose.msra.mxu0 %v439
    %457 = vmatmul.f32.gmra.mxu0 %v437
    %v458 = vpop.f32.mrf.mxu0
    %v459 = vadd.f32 0.0, %v458
    %460 = vdwg.mxu0
    %461 = vrot.lane.b32.xlu0 %v83, 104
    %v462 = vpop.permute.xlu0 %461
    %463 = vrot.lane.b32.xlu0 %v83, 72
    %v464 = vpop.permute.xlu0 %463
    %v465 = vsel %vm88, %v462, 0
    %v467 = vsel %vm88, %v464, 0
    %469 = vmatpush.xpose.msra.mxu0 0.0
    %470 = vmatpush.xpose.msra.mxu0 0.0
    %471 = vmatpush.xpose.msra.mxu0 0.0
    %472 = vmatpush.xpose.msra.mxu0 0.0
    %473 = vmatpush.xpose.msra.mxu0 0.0
    %474 = vmatpush.xpose.msra.mxu0 0.0
    %475 = vmatpush.xpose.msra.mxu0 0.0
    %476 = vmatpush.xpose.msra.mxu0 0.0
    %477 = vmatpush.xpose.msra.mxu0 0.0
    %478 = vmatpush.xpose.msra.mxu0 0.0
    %479 = vmatpush.xpose.msra.mxu0 0.0
    %480 = vmatpush.xpose.msra.mxu0 0.0
    %481 = vmatpush.xpose.msra.mxu0 0.0
    %482 = vmatpush.xpose.msra.mxu0 0.0
    %483 = vmatpush.xpose.msra.mxu0 0.0
    %484 = vmatpush.xpose.msra.mxu0 %v467
    %485 = vmatmul.f32.gmra.mxu0 %v465
    %v486 = vpop.f32.mrf.mxu0
    %v487 = vadd.f32 0.0, %v486
    %488 = vdwg.mxu0
    %v489 = vsel %vm88, %v459, -inf
    %490 = vmax.xlane.f32.xlu0 %v489
    %v491 = vpop.xlane.xlu0 %490
    %v492 = vsel %vm88, %v487, -inf
    %493 = vmax.xlane.f32.xlu0 %v492
    %v494 = vpop.xlane.xlu0 %493
    %v495 = vsub.f32 %v459, %v491
    %v496 = vsub.f32 %v487, %v494
    %v497 = vmul.f32 %v495, 1.442695
    %v498 = vpow.pop %v497
    %v499 = vmul.f32 %v496, 1.442695
    %v500 = vpow.pop %v499
    %v501 = vsel %vm88, %v498, 0.0
    %502 = vadd.xlane.f32.xlu0 %v501
    %v503 = vpop.xlane.xlu0 %502
    %v504 = vsel %vm88, %v500, 0.0
    %505 = vadd.xlane.f32.xlu0 %v504
    %v506 = vpop.xlane.xlu0 %505
    %v507 = vrcp.pop %v503
    %v508 = vmul.f32 %v503, %v507
    %v509 = vsub.f32 1.0, %v508
    %v510 = vmul.f32 %v507, %v509
    %v511 = vadd.f32 %v507, %v510
    %vm512 = vweird.f32 %v503
    %vm513 = vweird.f32 %v507
    %vm514 = vmor %vm512, %vm513
    %v515 = vsel %vm514, %v507, %v511
    %v516 = vand.u32 2147483647, %v503
    %vm517 = vcmp.eq.f32.partialorder %v516, 8.507059e+37
    %v518 = vand.u32 %v503, 2147483648
    %v519 = vor.u32 1.1754944e-38, %v518
    %v520 = vsel %vm517, %v519, %v515
    %v521 = vmul.f32 %v498, %v520
    %v522 = vrcp.pop %v506
    %v523 = vmul.f32 %v506, %v522
    %v524 = vsub.f32 1.0, %v523
    %v525 = vmul.f32 %v522, %v524
    %v526 = vadd.f32 %v522, %v525
    %vm527 = vweird.f32 %v506
    %vm528 = vweird.f32 %v522
    %vm529 = vmor %vm527, %vm528
    %v530 = vsel %vm529, %v522, %v526
    %v531 = vand.u32 2147483647, %v506
    %vm532 = vcmp.eq.f32.partialorder %v531, 8.507059e+37
    %v533 = vand.u32 %v506, 2147483648
    %v534 = vor.u32 1.1754944e-38, %v533
    %v535 = vsel %vm532, %v534, %v530
    %v536 = vmul.f32 %v500, %v535
    %539 = vrot.lane.b32.xlu0 %v521, 56
    %v540 = vpop.permute.xlu0 %539
    %541 = vrot.lane.b32.xlu0 %v536, 56
    %v542 = vpop.permute.xlu0 %541
    %vm545 = vcmask 523712
    %546 = vst.msk [vmem:[#allocation7] sm:$0xff] %vm545, %v540
    %547 = vst.msk [vmem:[#allocation7 + $0x8] sm:$0xff] %vm545, %v542
    %v548 = vadd.f32 %v431, %v521
    %v549 = vadd.f32 %v432, %v536
    %550 = vrot.lane.b32.xlu0 %v80, 64
    %v551 = vpop.permute.xlu0 %550
    %v554 = vsel %vm88, %v548, 0
    %556 = vmatpush.msra.mxu0 0.0
    %557 = vmatpush.msra.mxu0 0.0
    %558 = vmatpush.msra.mxu0 0.0
    %559 = vmatpush.msra.mxu0 0.0
    %560 = vmatpush.msra.mxu0 0.0
    %561 = vmatpush.msra.mxu0 0.0
    %562 = vmatpush.msra.mxu0 0.0
    %563 = vmatpush.msra.mxu0 0.0
    %564 = vmatpush.msra.mxu0 0.0
    %565 = vmatpush.msra.mxu0 0.0
    %566 = vmatpush.msra.mxu0 0.0
    %567 = vmatpush.msra.mxu0 0.0
    %568 = vmatpush.msra.mxu0 0.0
    %569 = vmatpush.msra.mxu0 0.0
    %570 = vmatpush.msra.mxu0 0.0
    %571 = vmatpush.msra.mxu0 %v551
    %572 = vmatmul.f32.gmra.mxu0 %v554
    %v573 = vpop.f32.mrf.mxu0
    %v574 = vadd.f32 0.0, %v573
    %575 = vdwg.mxu0
    %576 = vrot.lane.b32.xlu0 %v83, 64
    %v577 = vpop.permute.xlu0 %576
    %v580 = vsel %vm88, %v549, 0
    %582 = vmatpush.msra.mxu0 0.0
    %583 = vmatpush.msra.mxu0 0.0
    %584 = vmatpush.msra.mxu0 0.0
    %585 = vmatpush.msra.mxu0 0.0
    %586 = vmatpush.msra.mxu0 0.0
    %587 = vmatpush.msra.mxu0 0.0
    %588 = vmatpush.msra.mxu0 0.0
    %589 = vmatpush.msra.mxu0 0.0
    %590 = vmatpush.msra.mxu0 0.0
    %591 = vmatpush.msra.mxu0 0.0
    %592 = vmatpush.msra.mxu0 0.0
    %593 = vmatpush.msra.mxu0 0.0
    %594 = vmatpush.msra.mxu0 0.0
    %595 = vmatpush.msra.mxu0 0.0
    %596 = vmatpush.msra.mxu0 0.0
    %597 = vmatpush.msra.mxu0 %v577
    %598 = vmatmul.f32.gmra.mxu0 %v580
    %v599 = vpop.f32.mrf.mxu0
    %v600 = vadd.f32 0.0, %v599
    %601 = vdwg.mxu0
    %v603 = vsel %vm88, %v574, 0
    %v606 = vsel %vm88, %v600, 0
    %608 = vmatpush.msra.mxu0 0.0
    %609 = vmatpush.msra.mxu0 0.0
    %610 = vmatpush.msra.mxu0 0.0
    %611 = vmatpush.msra.mxu0 0.0
    %612 = vmatpush.msra.mxu0 0.0
    %613 = vmatpush.msra.mxu0 0.0
    %614 = vmatpush.msra.mxu0 0.0
    %615 = vmatpush.msra.mxu0 0.0
    %616 = vmatpush.msra.mxu0 0.0
    %617 = vmatpush.msra.mxu0 0.0
    %618 = vmatpush.msra.mxu0 0.0
    %619 = vmatpush.msra.mxu0 0.0
    %620 = vmatpush.msra.mxu0 0.0
    %621 = vmatpush.msra.mxu0 0.0
    %622 = vmatpush.msra.mxu0 0.0
    %623 = vmatpush.msra.mxu0 %v60
    %624 = vmatmul.f32.gmra.mxu0 %v603
    %v625 = vpop.f32.mrf.mxu0
    %v626 = vadd.f32 0.0, %v625
    %627 = vmatmul.f32.gmra.mxu0 %v606
    %v628 = vpop.f32.mrf.mxu0
    %v629 = vadd.f32 0.0, %v628
    %630 = vdwg.mxu0
    %vm631 = vcmask 261120
    %632 = vst.msk [vmem:[#allocation7] sm:$0xff] %vm631, %v626
    %633 = vst.msk [vmem:[#allocation7 + $0x8] sm:$0xff] %vm631, %v629
    // Predicated region
    $region18: #{tpu_custom_call.1} parent=1 // pred_check
      _
    $region19: #{tpu_custom_call.1} parent=1 // pred_check_branch
      %635 = sbr.rel (0) target = $region21
    $region20: #{tpu_custom_call.1} parent=1 // pred_region
      %637 = vsyncadd [#allocation4], 0
      %s638 = sshll.u32 [#allocation7], 4
      %s639 = int_to_ptr.vmem [resolvable:$true] %s638
      %s640 = sshll.u32 %s2, 4
      %s641 = int_to_ptr.hbm [resolvable:$true] %s640
      %646 = dma.vmem_to_hbm [thread:$0]  %s639, 256, %s641, [#allocation4], 128, 128, 8
    $region21: #{tpu_custom_call.1} parent=1 // pred_fallthru
      _
    // Predicated region
    $region22: #{tpu_custom_call.1} parent=1 // pred_check
      _
    $region23: #{tpu_custom_call.1} parent=1 // pred_check_branch
      %648 = sbr.rel (0) target = $region25
    $region24: #{tpu_custom_call.1} parent=1 // pred_region
      %650 = dma.done [#allocation4], 256
    $region25: #{tpu_custom_call.1} parent=1 // pred_fallthru
      _
    %651 = vsyncpa [#allocation3], 1
    %652 = vsyncpa [#allocation6], 1
    %653 = vsyncpa [#allocation4], 1

</llo_original>
